<compile_context>
chip_gen: v5e
topology: v5e:2x2
jax: 0.10.0
libtpu: 0.0.40
codegen_flags: <defaults>
</compile_context>

<pallas_src>
import functools

import jax
import jax.numpy as jnp
from jax.experimental import pallas as pl
from jax.experimental.pallas import tpu as pltpu


def policy_net_kernel(sT_ref, gT_ref, w1sT_ref, w1gT_ref, b1_ref, w2T_ref,
                      b2_ref, oT_ref):
    # fc1 on the (virtually) concatenated input, expressed as two MXU dots
    # into one f32 accumulator -- the concat never materializes.  All dots
    # have N = tb, so the MXU output columns are full-width (lane-dense).
    h = jnp.dot(w1sT_ref[...], sT_ref[...], preferred_element_type=jnp.float32)
    h = h + jnp.dot(w1gT_ref[...], gT_ref[...], preferred_element_type=jnp.float32)
    h = jnp.maximum(h + b1_ref[...], 0.0)          # [hidden, tb] bias+ReLU (VPU, lane-dense)
    # fc2
    y = jnp.dot(w2T_ref[...], h, preferred_element_type=jnp.float32)
    oT_ref[...] = (y + b2_ref[...]).astype(oT_ref.dtype)   # [action, tb] lane-dense store


def _round_up(x, m):
    return ((x + m - 1) // m) * m


def _default_tb(batch):
    # ~2 grid points (keeps both v7x TensorCores busy via the "parallel" axis)
    # with a lane-aligned tile; clamped to [128, 1024] so per-step overhead is
    # amortized without creating one giant step for very large batches.
    # On single-core v5e/v6e, callers can pass tb=batch for a single step.
    tb = _round_up(pl.cdiv(batch, 2), 128)
    return max(128, min(tb, 1024))


@functools.partial(jax.jit, static_argnames=("tb",))
def policy_net_forward(s, g, w1_sT, w1_gT, b1_c, w2_T, b2_c, *, tb=None):
    """s: [B, obs_dim], g: [B, goal_dim] -> [B, action_dim] (f32).

    Params are passed in the (one-time, outside-the-hot-path) transposed
    layout: w1_sT [hidden, obs], w1_gT [hidden, goal], b1_c [hidden, 1],
    w2_T [action, hidden], b2_c [action, 1].
    """
    batch, obs_dim = s.shape
    goal_dim = g.shape[1]
    hidden = w1_sT.shape[0]
    action_dim = w2_T.shape[0]

    if tb is None:
        tb = _default_tb(batch)
    tb = min(tb, _round_up(batch, 128))
    grid = (pl.cdiv(batch, tb),)   # rows independent -> ragged last block is
                                   # compute-on-pad but masked on writeback

    # Batch-in-lanes: put the batch on the lane (last) axis.  These transposes
    # are tiny ([B,8]/[B,4]); store activations transposed upstream to elide.
    s_t = s.T                      # [obs_dim, B]
    g_t = g.T                      # [goal_dim, B]

    out_t = pl.pallas_call(
        policy_net_kernel,
        out_shape=jax.ShapeDtypeStruct((action_dim, batch), jnp.float32),
        grid=grid,
        in_specs=[
            pl.BlockSpec((obs_dim, tb), lambda i: (0, i)),        # sT   (streamed)
            pl.BlockSpec((goal_dim, tb), lambda i: (0, i)),       # gT   (streamed)
            pl.BlockSpec((hidden, obs_dim), lambda i: (0, 0)),    # W1sT (resident)
            pl.BlockSpec((hidden, goal_dim), lambda i: (0, 0)),   # W1gT (resident)
            pl.BlockSpec((hidden, 1), lambda i: (0, 0)),          # b1   (resident)
            pl.BlockSpec((action_dim, hidden), lambda i: (0, 0)), # W2T  (resident)
            pl.BlockSpec((action_dim, 1), lambda i: (0, 0)),      # b2   (resident)
        ],
        out_specs=pl.BlockSpec((action_dim, tb), lambda i: (0, i)),
        compiler_params=pltpu.CompilerParams(
            dimension_semantics=("parallel",),   # megacore splits the batch
            vmem_limit_bytes=32 * 1024 * 1024,   # huge headroom on v5e/v6e/v7x
        ),
    )(s_t, g_t, w1_sT, w1_gT, b1_c, w2_T, b2_c)

    return out_t.T                 # [B, action_dim]


def init_params(key, obs_dim, goal_dim, action_dim, hidden_units):
    """Deterministic init matching nn.Linear's default U(-1/sqrt(fan_in), ...)."""
    in1 = obs_dim + goal_dim
    k1, k2, k3, k4 = jax.random.split(key, 4)
    bound1 = 1.0 / jnp.sqrt(jnp.float32(in1))
    bound2 = 1.0 / jnp.sqrt(jnp.float32(hidden_units))
    w1 = jax.random.uniform(k1, (in1, hidden_units), jnp.float32, -bound1, bound1)
    b1 = jax.random.uniform(k2, (1, hidden_units), jnp.float32, -bound1, bound1)
    w2 = jax.random.uniform(k3, (hidden_units, action_dim), jnp.float32, -bound2, bound2)
    b2 = jax.random.uniform(k4, (1, action_dim), jnp.float32, -bound2, bound2)
    return w1, b1, w2, b2


if __name__ == "__main__":
    # Shapes consistent with the module's forward; batch sized so the default
    # tile gives grid=(2,) (exercises the parallel batch axis / v7x megacore).
    batch = 256
    obs_dim = 8
    goal_dim = 4
    action_dim = 4
    hidden_units = 32

    key = jax.random.PRNGKey(0)
    ks, kg, kp = jax.random.split(key, 3)
    s = jax.random.normal(ks, (batch, obs_dim), jnp.float32)
    g = jax.random.normal(kg, (batch, goal_dim), jnp.float32)
    w1, b1, w2, b2 = init_params(kp, obs_dim, goal_dim, action_dim, hidden_units)

    # One-time parameter prep (outside the hot path): split fc1's weight along
    # the input axis and transpose everything into the batch-in-lanes layout.
    w1_sT = w1[:obs_dim, :].T                 # [hidden, obs_dim]
    w1_gT = w1[obs_dim:, :].T                 # [hidden, goal_dim]
    b1_c = b1.reshape(hidden_units, 1)        # [hidden, 1]
    w2_T = w2.T                               # [action_dim, hidden]
    b2_c = b2.reshape(action_dim, 1)          # [action_dim, 1]

    out = policy_net_forward(s, g, w1_sT, w1_gT, b1_c, w2_T, b2_c)
    jax.block_until_ready(out)

    # Pure-JAX reference (identical to the PyTorch forward).
    x = jnp.concatenate([s, g], axis=1)
    ref = jnp.maximum(x @ w1 + b1, 0.0) @ w2 + b2
    assert out.shape == (batch, action_dim)
    assert jnp.allclose(out, ref, atol=1e-4, rtol=1e-4), "mismatch vs reference"

    print("KERNEL_OK")
</pallas_src>

<mosaic_0001>
module attributes {stable_mosaic.version = 11 : i64} {
  func.func @policy_net_kernel(%arg0: i32, %arg1: memref<8x128xf32, #tpu.memory_space<vmem>>, %arg2: memref<4x128xf32, #tpu.memory_space<vmem>>, %arg3: memref<32x8xf32, #tpu.memory_space<vmem>>, %arg4: memref<32x4xf32, #tpu.memory_space<vmem>>, %arg5: memref<32x1xf32, #tpu.memory_space<vmem>>, %arg6: memref<4x32xf32, #tpu.memory_space<vmem>>, %arg7: memref<4x1xf32, #tpu.memory_space<vmem>>, %arg8: memref<4x128xf32, #tpu.memory_space<vmem>>) attributes {dimension_semantics = [#tpu.dimension_semantics<parallel>], iteration_bounds = array<i64: 2>, scalar_prefetch = 0 : i64, scratch_operands = 0 : i64, tpu.core_type = #tpu.core_type<tc>, window_params = [{transform_indices = @transform_0, window_bounds = array<i64: 8, 128>}, {transform_indices = @transform_1, window_bounds = array<i64: 4, 128>}, {pipeline_mode = #tpu.pipeline_mode<synchronous>, transform_indices = @transform_2, window_bounds = array<i64: 32, 8>}, {pipeline_mode = #tpu.pipeline_mode<synchronous>, transform_indices = @transform_3, window_bounds = array<i64: 32, 4>}, {pipeline_mode = #tpu.pipeline_mode<synchronous>, transform_indices = @transform_4, window_bounds = array<i64: 32, 1>}, {pipeline_mode = #tpu.pipeline_mode<synchronous>, transform_indices = @transform_5, window_bounds = array<i64: 4, 32>}, {pipeline_mode = #tpu.pipeline_mode<synchronous>, transform_indices = @transform_6, window_bounds = array<i64: 4, 1>}, {transform_indices = @transform_7, window_bounds = array<i64: 4, 128>}]} {
    %c0 = arith.constant 0 : index
    %c0_0 = arith.constant 0 : index
    %0 = vector.load %arg3[%c0, %c0_0] : memref<32x8xf32, #tpu.memory_space<vmem>>, vector<32x8xf32>
    %c0_1 = arith.constant 0 : index
    %c0_2 = arith.constant 0 : index
    %1 = vector.load %arg1[%c0_1, %c0_2] : memref<8x128xf32, #tpu.memory_space<vmem>>, vector<8x128xf32>
    %cst = arith.constant dense<0.000000e+00> : vector<32x128xf32>
    %2 = tpu.matmul %0, %1, %cst {dimension_numbers = #tpu.dot_dimension_numbers<[1], [0], [0], [1], [0, 0, 1, 1], [], []>} : vector<32x8xf32>, vector<8x128xf32>, vector<32x128xf32> -> vector<32x128xf32>
    %c0_3 = arith.constant 0 : index
    %c0_4 = arith.constant 0 : index
    %3 = vector.load %arg4[%c0_3, %c0_4] : memref<32x4xf32, #tpu.memory_space<vmem>>, vector<32x4xf32>
    %c0_5 = arith.constant 0 : index
    %c0_6 = arith.constant 0 : index
    %4 = vector.load %arg2[%c0_5, %c0_6] : memref<4x128xf32, #tpu.memory_space<vmem>>, vector<4x128xf32>
    %cst_7 = arith.constant dense<0.000000e+00> : vector<32x128xf32>
    %5 = tpu.matmul %3, %4, %cst_7 {dimension_numbers = #tpu.dot_dimension_numbers<[1], [0], [0], [1], [0, 0, 1, 1], [], []>} : vector<32x4xf32>, vector<4x128xf32>, vector<32x128xf32> -> vector<32x128xf32>
    %6 = arith.addf %2, %5 : vector<32x128xf32>
    %c0_8 = arith.constant 0 : index
    %c0_9 = arith.constant 0 : index
    %7 = vector.load %arg5[%c0_8, %c0_9] : memref<32x1xf32, #tpu.memory_space<vmem>>, vector<32x1xf32>
    %8 = vector.broadcast %7 : vector<32x1xf32> to vector<32x128xf32>
    %9 = arith.addf %6, %8 : vector<32x128xf32>
    %cst_10 = arith.constant 0.000000e+00 : f32
    %10 = vector.broadcast %cst_10 : f32 to vector<32x128xf32>
    %11 = arith.maximumf %9, %10 : vector<32x128xf32>
    %c0_11 = arith.constant 0 : index
    %c0_12 = arith.constant 0 : index
    %12 = vector.load %arg6[%c0_11, %c0_12] : memref<4x32xf32, #tpu.memory_space<vmem>>, vector<4x32xf32>
    %cst_13 = arith.constant dense<0.000000e+00> : vector<4x128xf32>
    %13 = tpu.matmul %12, %11, %cst_13 {dimension_numbers = #tpu.dot_dimension_numbers<[1], [0], [0], [1], [0, 0, 1, 1], [], []>} : vector<4x32xf32>, vector<32x128xf32>, vector<4x128xf32> -> vector<4x128xf32>
    %c0_14 = arith.constant 0 : index
    %c0_15 = arith.constant 0 : index
    %14 = vector.load %arg7[%c0_14, %c0_15] : memref<4x1xf32, #tpu.memory_space<vmem>>, vector<4x1xf32>
    %15 = vector.broadcast %14 : vector<4x1xf32> to vector<4x128xf32>
    %16 = arith.addf %13, %15 : vector<4x128xf32>
    %c0_16 = arith.constant 0 : index
    %c0_17 = arith.constant 0 : index
    %17 = vector.load %arg8[%c0_16, %c0_17] : memref<4x128xf32, #tpu.memory_space<vmem>>, vector<4x128xf32>
    tpu.vector_store %arg8[%c0_16, %c0_17], %16 {strides = array<i32>} : memref<4x128xf32, #tpu.memory_space<vmem>>, vector<4x128xf32>,
    return
  }
  func.func @transform_0(%arg0: i32) -> (i32, i32) {
    %c0_i32 = arith.constant 0 : i32
    %c0_i32_0 = arith.constant 0 : i32
    return %c0_i32, %arg0 : i32, i32
  }
  func.func @transform_1(%arg0: i32) -> (i32, i32) {
    %c0_i32 = arith.constant 0 : i32
    %c0_i32_0 = arith.constant 0 : i32
    return %c0_i32, %arg0 : i32, i32
  }
  func.func @transform_2(%arg0: i32) -> (i32, i32) {
    %c0_i32 = arith.constant 0 : i32
    %c0_i32_0 = arith.constant 0 : i32
    %c0_i32_1 = arith.constant 0 : i32
    return %c0_i32, %c0_i32_0 : i32, i32
  }
  func.func @transform_3(%arg0: i32) -> (i32, i32) {
    %c0_i32 = arith.constant 0 : i32
    %c0_i32_0 = arith.constant 0 : i32
    %c0_i32_1 = arith.constant 0 : i32
    return %c0_i32, %c0_i32_0 : i32, i32
  }
  func.func @transform_4(%arg0: i32) -> (i32, i32) {
    %c0_i32 = arith.constant 0 : i32
    %c0_i32_0 = arith.constant 0 : i32
    %c0_i32_1 = arith.constant 0 : i32
    return %c0_i32, %c0_i32_0 : i32, i32
  }
  func.func @transform_5(%arg0: i32) -> (i32, i32) {
    %c0_i32 = arith.constant 0 : i32
    %c0_i32_0 = arith.constant 0 : i32
    %c0_i32_1 = arith.constant 0 : i32
    return %c0_i32, %c0_i32_0 : i32, i32
  }
  func.func @transform_6(%arg0: i32) -> (i32, i32) {
    %c0_i32 = arith.constant 0 : i32
    %c0_i32_0 = arith.constant 0 : i32
    %c0_i32_1 = arith.constant 0 : i32
    return %c0_i32, %c0_i32_0 : i32, i32
  }
  func.func @transform_7(%arg0: i32) -> (i32, i32) {
    %c0_i32 = arith.constant 0 : i32
    %c0_i32_0 = arith.constant 0 : i32
    return %c0_i32, %arg0 : i32, i32
  }
}

</mosaic_0001>

<llo_original>
// kernel: policy_net_forward.1
$region0: #{policy_net_forward.1}
  #allocation0 [shape = 'u32[]', space=smem, size = 0x4, offset = 0x4, fixed_abs, tag = 'smem constant byte address 0x4 - core index']
  #allocation1 [shape = 'u32[72,128]{1,0:T(1,128)}', space=vmem, size = 0x9000, scoped, tag = 'internal scratch']
  %s0 = inlined_call_operand.vmem [shape: f32[8,256], index: 0, kind: input, shape index: {}]
  %s1 = inlined_call_operand.vmem [shape: f32[4,256], index: 1, kind: input, shape index: {}]
  %s2 = inlined_call_operand.vmem [shape: f32[32,8], index: 2, kind: input, shape index: {}]
  %s3 = inlined_call_operand.vmem [shape: f32[32,4], index: 3, kind: input, shape index: {}]
  %s4 = inlined_call_operand.vmem [shape: f32[32,1], index: 4, kind: input, shape index: {}]
  %s5 = inlined_call_operand.vmem [shape: f32[4,32], index: 5, kind: input, shape index: {}]
  %s6 = inlined_call_operand.vmem [shape: f32[4,1], index: 6, kind: input, shape index: {}]
  %s7 = inlined_call_operand.hbm [shape: f32[4,256], index: 7, kind: output, shape index: {}]
  %s8 = sld [smem:[#allocation0]]
  $region61: #{policy_net_forward.1} parent=0
    _
  %s10 = ssub.s32 1, %s8
  %s11 = scalar_select 0, %s10, %s8
  $region1: #{policy_net_forward.1} parent=0
    #allocation2 [shape = 'u8[4096]{0}', space=vmem, size = 0x1000, scoped, tag = 'output window, operand 0']
    #allocation3 [shape = 's32[2]{0}', space=sflag, size = 0x8, scoped, tag = 'scoped memory for policy_net_forward.1']
    %12 = vsyncpa [#allocation3], 0
    %s13 = scalar_lea.sflag [#allocation3], 1
    %14 = vsyncpa %s13, 0
    loop: start=0, step=1, limit=4
    $region2: #{policy_net_forward.1} parent=1 // loop_pre_header
      _
    $region3: #{policy_net_forward.1} parent=1 // loop_header
      %s16 = sphi 0, %s20
      %p17 = scmp.ge.s32.totalorder %s16, 4
      %s26 = sphi 0, %s28
      %s29 = sphi 0, %s26
      %s30 = sphi 0, %s29
      %s46 = sphi 0, %s30
      %s52 = sphi 0, %s54
      %s55 = sphi 0, %s52
      %s56 = sphi 0, %s55
      %s72 = sphi 0, %s56
      %s76 = sphi 0, %s76
      %s78 = sphi 0, %s76
      %s79 = sphi 0, %s78
      %s93 = sphi 0, %s79
      %s97 = sphi 0, %s97
      %s99 = sphi 0, %s97
      %s100 = sphi 0, %s99
      %s114 = sphi 0, %s100
      %s118 = sphi 0, %s118
      %s120 = sphi 0, %s118
      %s121 = sphi 0, %s120
      %s135 = sphi 0, %s121
      %s139 = sphi 0, %s139
      %s141 = sphi 0, %s139
      %s142 = sphi 0, %s141
      %s156 = sphi 0, %s142
      %s160 = sphi 0, %s160
      %s162 = sphi 0, %s160
      %s163 = sphi 0, %s162
      %s177 = sphi 0, %s163
      %s183 = sphi 0, %s185
      %s186 = sphi 0, %s183
      %s187 = sphi 0, %s186
      %s203 = sphi 0, %s187
    $region4: #{policy_net_forward.1} parent=1 // loop_header_branch
      %19 = sbr.rel (%p17) target = $region8
    $region5: #{policy_net_forward.1} parent=1 // loop_body
      %s21 = ssub.s32 %s16, 1
      %s22 = ssub.s32 %s16, 2
      %s23 = sadd.s32 %s16, 1
      %s24 = ssub.s32 %s16, %s23
      %p25 = scmp.eq.s32.totalorder %s24, 0
      %s27 = sadd.s32 %s26, 1
      %s28 = scalar_select %p25, %s26, %s27
      %p31 = pneg %p25
      %p32 = scmp.eq.s32.totalorder %s16, 1
      %p33 = por %p31, %p32
      %p34 = scmp.ne.s32.totalorder %s26, %s29
      %p35 = scmp.eq.s32.totalorder %s16, 0
      %p36 = por %p34, %p35
      %p37 = scmp.ne.s32.totalorder %s26, %s29
      %p38 = scmp.eq.s32.totalorder %s21, 1
      %p39 = por %p37, %p38
      %p40 = scmp.ne.s32.totalorder %s29, %s30
      %p41 = scmp.eq.s32.totalorder %s21, 0
      %p42 = por %p40, %p41
      %p43 = scmp.ne.s32.totalorder %s29, %s30
      %p44 = scmp.eq.s32.totalorder %s22, 1
      %p45 = por %p43, %p44
      %p47 = scmp.ne.s32.totalorder %s30, %s46
      %p48 = scmp.eq.s32.totalorder %s22, 0
      %p49 = por %p47, %p48
      %s50 = ssub.s32 %s16, %s23
      %p51 = scmp.eq.s32.totalorder %s50, 0
      %s53 = sadd.s32 %s52, 1
      %s54 = scalar_select %p51, %s52, %s53
      %p57 = pneg %p51
      %p58 = scmp.eq.s32.totalorder %s16, 1
      %p59 = por %p57, %p58
      %p60 = scmp.ne.s32.totalorder %s52, %s55
      %p61 = scmp.eq.s32.totalorder %s16, 0
      %p62 = por %p60, %p61
      %p63 = scmp.ne.s32.totalorder %s52, %s55
      %p64 = scmp.eq.s32.totalorder %s21, 1
      %p65 = por %p63, %p64
      %p66 = scmp.ne.s32.totalorder %s55, %s56
      %p67 = scmp.eq.s32.totalorder %s21, 0
      %p68 = por %p66, %p67
      %p69 = scmp.ne.s32.totalorder %s55, %s56
      %p70 = scmp.eq.s32.totalorder %s22, 1
      %p71 = por %p69, %p70
      %p73 = scmp.ne.s32.totalorder %s56, %s72
      %p74 = scmp.eq.s32.totalorder %s22, 0
      %p75 = por %p73, %p74
      %s77 = sadd.s32 %s76, 1
      %p80 = scmp.eq.s32.totalorder %s16, 1
      %p81 = scmp.ne.s32.totalorder %s76, %s78
      %p82 = scmp.eq.s32.totalorder %s16, 0
      %p83 = por %p81, %p82
      %p84 = scmp.ne.s32.totalorder %s76, %s78
      %p85 = scmp.eq.s32.totalorder %s21, 1
      %p86 = por %p84, %p85
      %p87 = scmp.ne.s32.totalorder %s78, %s79
      %p88 = scmp.eq.s32.totalorder %s21, 0
      %p89 = por %p87, %p88
      %p90 = scmp.ne.s32.totalorder %s78, %s79
      %p91 = scmp.eq.s32.totalorder %s22, 1
      %p92 = por %p90, %p91
      %p94 = scmp.ne.s32.totalorder %s79, %s93
      %p95 = scmp.eq.s32.totalorder %s22, 0
      %p96 = por %p94, %p95
      %s98 = sadd.s32 %s97, 1
      %p101 = scmp.eq.s32.totalorder %s16, 1
      %p102 = scmp.ne.s32.totalorder %s97, %s99
      %p103 = scmp.eq.s32.totalorder %s16, 0
      %p104 = por %p102, %p103
      %p105 = scmp.ne.s32.totalorder %s97, %s99
      %p106 = scmp.eq.s32.totalorder %s21, 1
      %p107 = por %p105, %p106
      %p108 = scmp.ne.s32.totalorder %s99, %s100
      %p109 = scmp.eq.s32.totalorder %s21, 0
      %p110 = por %p108, %p109
      %p111 = scmp.ne.s32.totalorder %s99, %s100
      %p112 = scmp.eq.s32.totalorder %s22, 1
      %p113 = por %p111, %p112
      %p115 = scmp.ne.s32.totalorder %s100, %s114
      %p116 = scmp.eq.s32.totalorder %s22, 0
      %p117 = por %p115, %p116
      %s119 = sadd.s32 %s118, 1
      %p122 = scmp.eq.s32.totalorder %s16, 1
      %p123 = scmp.ne.s32.totalorder %s118, %s120
      %p124 = scmp.eq.s32.totalorder %s16, 0
      %p125 = por %p123, %p124
      %p126 = scmp.ne.s32.totalorder %s118, %s120
      %p127 = scmp.eq.s32.totalorder %s21, 1
      %p128 = por %p126, %p127
      %p129 = scmp.ne.s32.totalorder %s120, %s121
      %p130 = scmp.eq.s32.totalorder %s21, 0
      %p131 = por %p129, %p130
      %p132 = scmp.ne.s32.totalorder %s120, %s121
      %p133 = scmp.eq.s32.totalorder %s22, 1
      %p134 = por %p132, %p133
      %p136 = scmp.ne.s32.totalorder %s121, %s135
      %p137 = scmp.eq.s32.totalorder %s22, 0
      %p138 = por %p136, %p137
      %s140 = sadd.s32 %s139, 1
      %p143 = scmp.eq.s32.totalorder %s16, 1
      %p144 = scmp.ne.s32.totalorder %s139, %s141
      %p145 = scmp.eq.s32.totalorder %s16, 0
      %p146 = por %p144, %p145
      %p147 = scmp.ne.s32.totalorder %s139, %s141
      %p148 = scmp.eq.s32.totalorder %s21, 1
      %p149 = por %p147, %p148
      %p150 = scmp.ne.s32.totalorder %s141, %s142
      %p151 = scmp.eq.s32.totalorder %s21, 0
      %p152 = por %p150, %p151
      %p153 = scmp.ne.s32.totalorder %s141, %s142
      %p154 = scmp.eq.s32.totalorder %s22, 1
      %p155 = por %p153, %p154
      %p157 = scmp.ne.s32.totalorder %s142, %s156
      %p158 = scmp.eq.s32.totalorder %s22, 0
      %p159 = por %p157, %p158
      %s161 = sadd.s32 %s160, 1
      %p164 = scmp.eq.s32.totalorder %s16, 1
      %p165 = scmp.ne.s32.totalorder %s160, %s162
      %p166 = scmp.eq.s32.totalorder %s16, 0
      %p167 = por %p165, %p166
      %p168 = scmp.ne.s32.totalorder %s160, %s162
      %p169 = scmp.eq.s32.totalorder %s21, 1
      %p170 = por %p168, %p169
      %p171 = scmp.ne.s32.totalorder %s162, %s163
      %p172 = scmp.eq.s32.totalorder %s21, 0
      %p173 = por %p171, %p172
      %p174 = scmp.ne.s32.totalorder %s162, %s163
      %p175 = scmp.eq.s32.totalorder %s22, 1
      %p176 = por %p174, %p175
      %p178 = scmp.ne.s32.totalorder %s163, %s177
      %p179 = scmp.eq.s32.totalorder %s22, 0
      %p180 = por %p178, %p179
      %s181 = ssub.s32 %s16, %s23
      %p182 = scmp.eq.s32.totalorder %s181, 0
      %s184 = sadd.s32 %s183, 1
      %s185 = scalar_select %p182, %s183, %s184
      %p188 = pneg %p182
      %p189 = scmp.eq.s32.totalorder %s16, 1
      %p190 = por %p188, %p189
      %p191 = scmp.ne.s32.totalorder %s183, %s186
      %p192 = scmp.eq.s32.totalorder %s16, 0
      %p193 = por %p191, %p192
      %p194 = scmp.ne.s32.totalorder %s183, %s186
      %p195 = scmp.eq.s32.totalorder %s21, 1
      %p196 = por %p194, %p195
      %p197 = scmp.ne.s32.totalorder %s186, %s187
      %p198 = scmp.eq.s32.totalorder %s21, 0
      %p199 = por %p197, %p198
      %p200 = scmp.ne.s32.totalorder %s186, %s187
      %p201 = scmp.eq.s32.totalorder %s22, 1
      %p202 = por %p200, %p201
      %p204 = scmp.ne.s32.totalorder %s187, %s203
      %p205 = scmp.eq.s32.totalorder %s22, 0
      %p206 = por %p204, %p205
      %p207 = scmp.le.s32.totalorder 1, %s16
      %p208 = scmp.lt.s32.totalorder %s16, 3
      %p209 = pnand %p207, %p208
      %p210 = pneg %p209
      // Predicated region
      $region9: #{policy_net_forward.1} parent=5 // pred_check
        _
      $region10: #{policy_net_forward.1} parent=5 // pred_check_branch
        %212 = sbr.rel (%p209) target = $region12
      $region11: #{policy_net_forward.1} parent=5 // pred_region
        %s213 = ssub.s32 %s16, 1
        // Predicated region
        $region13: #{policy_net_forward.1} parent=11 // pred_check
          %p214 = pneg %p89
        $region14: #{policy_net_forward.1} parent=11 // pred_check_branch
          %216 = sbr.rel (%p214) target = $region16
        $region15: #{policy_net_forward.1} parent=11 // pred_region
          _
        $region16: #{policy_net_forward.1} parent=11 // pred_fallthru
          _
        // Predicated region
        $region17: #{policy_net_forward.1} parent=11 // pred_check
          %p217 = pneg %p110
        $region18: #{policy_net_forward.1} parent=11 // pred_check_branch
          %219 = sbr.rel (%p217) target = $region20
        $region19: #{policy_net_forward.1} parent=11 // pred_region
          _
        $region20: #{policy_net_forward.1} parent=11 // pred_fallthru
          _
        // Predicated region
        $region21: #{policy_net_forward.1} parent=11 // pred_check
          %p220 = pneg %p131
        $region22: #{policy_net_forward.1} parent=11 // pred_check_branch
          %222 = sbr.rel (%p220) target = $region24
        $region23: #{policy_net_forward.1} parent=11 // pred_region
          _
        $region24: #{policy_net_forward.1} parent=11 // pred_fallthru
          _
        // Predicated region
        $region25: #{policy_net_forward.1} parent=11 // pred_check
          %p223 = pneg %p152
        $region26: #{policy_net_forward.1} parent=11 // pred_check_branch
          %225 = sbr.rel (%p223) target = $region28
        $region27: #{policy_net_forward.1} parent=11 // pred_region
          _
        $region28: #{policy_net_forward.1} parent=11 // pred_fallthru
          _
        // Predicated region
        $region29: #{policy_net_forward.1} parent=11 // pred_check
          %p226 = pneg %p173
        $region30: #{policy_net_forward.1} parent=11 // pred_check_branch
          %228 = sbr.rel (%p226) target = $region32
        $region31: #{policy_net_forward.1} parent=11 // pred_region
          _
        $region32: #{policy_net_forward.1} parent=11 // pred_fallthru
          _
      $region12: #{policy_net_forward.1} parent=5 // pred_fallthru
        _
      %p229 = scmp.lt.s32.totalorder %s16, 2
      // Predicated region
      $region33: #{policy_net_forward.1} parent=5 // pred_check
        %p230 = pneg %p229
      $region34: #{policy_net_forward.1} parent=5 // pred_check_branch
        %232 = sbr.rel (%p230) target = $region36
      $region35: #{policy_net_forward.1} parent=5 // pred_region
        // Predicated region
        $region37: #{policy_net_forward.1} parent=35 // pred_check
          %p233 = pneg %p36
        $region38: #{policy_net_forward.1} parent=35 // pred_check_branch
          %235 = sbr.rel (%p233) target = $region40
        $region39: #{policy_net_forward.1} parent=35 // pred_region
          %p236 = scmp.lt.s32.totalorder %s16, 1
          %s237 = scalar_select %p236, %s16, 1
          %s238 = smul.addr %s237, 8
          %s239 = scalar_lea.vmem %s0, %s238
        $region40: #{policy_net_forward.1} parent=35 // pred_fallthru
          _
        // Predicated region
        $region41: #{policy_net_forward.1} parent=35 // pred_check
          %p240 = pneg %p62
        $region42: #{policy_net_forward.1} parent=35 // pred_check_branch
          %242 = sbr.rel (%p240) target = $region44
        $region43: #{policy_net_forward.1} parent=35 // pred_region
          %p243 = scmp.lt.s32.totalorder %s16, 1
          %s244 = scalar_select %p243, %s16, 1
          %s245 = smul.addr %s244, 4
          %s246 = scalar_lea.vmem %s1, %s245
        $region44: #{policy_net_forward.1} parent=35 // pred_fallthru
          _
      $region36: #{policy_net_forward.1} parent=5 // pred_fallthru
        _
      %p247 = scmp.le.s32.totalorder 1, %s16
      %p248 = scmp.lt.s32.totalorder %s16, 3
      %p249 = pnand %p247, %p248
      %p250 = pneg %p249
      // Predicated region
      $region45: #{policy_net_forward.1} parent=5 // pred_check
        _
      $region46: #{policy_net_forward.1} parent=5 // pred_check_branch
        %252 = sbr.rel (%p249) target = $region48
      $region47: #{policy_net_forward.1} parent=5 // pred_region
        %s253 = ssub.s32 %s16, 1
        %p254 = scmp.lt.s32.totalorder %s21, 1
        %s255 = scalar_select %p254, %s21, 1
        %s256 = smul.addr %s255, 8
        %s257 = scalar_lea.vmem %s0, %s256
        %p258 = pneg %p42
        %p259 = pneg %p39
        %p260 = scmp.lt.s32.totalorder %s21, 1
        %s261 = scalar_select %p260, %s21, 1
        %s262 = smul.addr %s261, 4
        %s263 = scalar_lea.vmem %s1, %s262
        %p264 = pneg %p68
        %p265 = pneg %p65
        %p266 = pneg %p89
        %p267 = pneg %p86
        %p268 = pneg %p110
        %p269 = pneg %p107
        %p270 = pneg %p131
        %p271 = pneg %p128
        %p272 = pneg %p152
        %p273 = pneg %p149
        %p274 = pneg %p173
        %p275 = pneg %p170
        %p276 = pneg %p199
        %p277 = pneg %p196
        %s278 = sand.u32 %s186, 1
        %s279 = scalar_lea.sflag [#allocation3], %s278
        %s280 = sand.u32 %s186, 1
        %s281 = smul.addr %s280, 4
        %s282 = scalar_lea.vmem [#allocation2], %s281
        %p283 = scmp.lt.s32.totalorder %s21, 1
        %s284 = scalar_select %p283, %s21, 1
        %s285 = smul.addr %s284, 8
        %s286 = scalar_lea.vmem %s0, %s285
        %p287 = scmp.lt.s32.totalorder %s21, 1
        %s288 = scalar_select %p287, %s21, 1
        %s289 = smul.addr %s288, 4
        %s290 = scalar_lea.vmem %s1, %s289
        %v291 = vld [vmem:[%s2] sm:$0xff]
        %v292 = vld [vmem:[%s2 + $0x8] sm:$0xff]
        %v293 = vld [vmem:[%s2 + $0x10] sm:$0xff]
        %v294 = vld [vmem:[%s2 + $0x18] sm:$0xff]
        %v295 = vld [vmem:[%s286] sm:$0xff]
        %v296 = vld [vmem:[%s3] sm:$0xff]
        %v297 = vld [vmem:[%s3 + $0x8] sm:$0xff]
        %v298 = vld [vmem:[%s3 + $0x10] sm:$0xff]
        %v299 = vld [vmem:[%s3 + $0x18] sm:$0xff]
        %v300 = vld [vmem:[%s290] sm:$0xf]
        %vm301 = vcmask 31744
        %v303 = vsel %vm301, %v296, 0
        %v306 = vsel %vm301, %v297, 0
        %v309 = vsel %vm301, %v298, 0
        %v312 = vsel %vm301, %v299, 0
        %vm314 = vcmask 1043456
        %v316 = vsel %vm314, %v300, 0
        %318 = vmatpush.msra.mxu0 0.0
        %319 = vmatpush.msra.mxu0 0.0
        %320 = vmatpush.msra.mxu0 0.0
        %321 = vmatpush.msra.mxu0 0.0
        %322 = vmatpush.msra.mxu0 0.0
        %323 = vmatpush.msra.mxu0 0.0
        %324 = vmatpush.msra.mxu0 0.0
        %325 = vmatpush.msra.mxu0 0.0
        %326 = vmatpush.msra.mxu0 0.0
        %327 = vmatpush.msra.mxu0 0.0
        %328 = vmatpush.msra.mxu0 0.0
        %329 = vmatpush.msra.mxu0 0.0
        %330 = vmatpush.msra.mxu0 0.0
        %331 = vmatpush.msra.mxu0 0.0
        %332 = vmatpush.msra.mxu0 0.0
        %333 = vmatpush.msra.mxu0 %v316
        %334 = vmatmul.f32.gmra.mxu0 %v303
        %v335 = vpop.f32.mrf.mxu0
        %v336 = vadd.f32 0.0, %v335
        %337 = vmatmul.f32.gmra.mxu0 %v306
        %v338 = vpop.f32.mrf.mxu0
        %v339 = vadd.f32 0.0, %v338
        %340 = vmatmul.f32.gmra.mxu0 %v309
        %v341 = vpop.f32.mrf.mxu0
        %v342 = vadd.f32 0.0, %v341
        %343 = vmatmul.f32.gmra.mxu0 %v312
        %v344 = vpop.f32.mrf.mxu0
        %v345 = vadd.f32 0.0, %v344
        %346 = vdwg.mxu0
        %vm347 = vcmask 64512
        %v349 = vsel %vm347, %v291, 0
        %v352 = vsel %vm347, %v292, 0
        %v355 = vsel %vm347, %v293, 0
        %v358 = vsel %vm347, %v294, 0
        %360 = vmatpush.msra.mxu0 0.0
        %361 = vmatpush.msra.mxu0 0.0
        %362 = vmatpush.msra.mxu0 0.0
        %363 = vmatpush.msra.mxu0 0.0
        %364 = vmatpush.msra.mxu0 0.0
        %365 = vmatpush.msra.mxu0 0.0
        %366 = vmatpush.msra.mxu0 0.0
        %367 = vmatpush.msra.mxu0 0.0
        %368 = vmatpush.msra.mxu0 0.0
        %369 = vmatpush.msra.mxu0 0.0
        %370 = vmatpush.msra.mxu0 0.0
        %371 = vmatpush.msra.mxu0 0.0
        %372 = vmatpush.msra.mxu0 0.0
        %373 = vmatpush.msra.mxu0 0.0
        %374 = vmatpush.msra.mxu0 0.0
        %375 = vmatpush.msra.mxu0 %v295
        %376 = vmatmul.f32.gmra.mxu0 %v349
        %v377 = vpop.f32.mrf.mxu0
        %v378 = vadd.f32 %v336, %v377
        %379 = vmatmul.f32.gmra.mxu0 %v352
        %v380 = vpop.f32.mrf.mxu0
        %v381 = vadd.f32 %v339, %v380
        %382 = vmatmul.f32.gmra.mxu0 %v355
        %v383 = vpop.f32.mrf.mxu0
        %v384 = vadd.f32 %v342, %v383
        %385 = vmatmul.f32.gmra.mxu0 %v358
        %v386 = vpop.f32.mrf.mxu0
        %v387 = vadd.f32 %v345, %v386
        %388 = vdwg.mxu0
        %v389 = vld [vmem:[%s4] sm:$0xff]
        %v390 = vld [vmem:[%s4 + $0x8] sm:$0xff]
        %v391 = vld [vmem:[%s4 + $0x10] sm:$0xff]
        %v392 = vld [vmem:[%s4 + $0x18] sm:$0xff]
        %394 = vset.pattern.permute.xlu0 0
        %395 = vperm.xlu0 %394, %v389
        %v396 = vpop.permute.xlu0 %395
        %399 = vset.pattern.permute.xlu0 0
        %400 = vperm.xlu0 %399, %v390
        %v401 = vpop.permute.xlu0 %400
        %404 = vset.pattern.permute.xlu0 0
        %405 = vperm.xlu0 %404, %v391
        %v406 = vpop.permute.xlu0 %405
        %409 = vset.pattern.permute.xlu0 0
        %410 = vperm.xlu0 %409, %v392
        %v411 = vpop.permute.xlu0 %410
        %v413 = vadd.f32 %v378, %v396
        %v414 = vadd.f32 %v381, %v401
        %v415 = vadd.f32 %v384, %v406
        %v416 = vadd.f32 %v387, %v411
        %v417 = vmax.f32 %v413, 0.0
        %v418 = vmax.f32 %v414, 0.0
        %v419 = vmax.f32 %v415, 0.0
        %v420 = vmax.f32 %v416, 0.0
        %v421 = vld [vmem:[%s5] sm:$0xf]
        %v422 = vld [vmem:[%s6] sm:$0xf]
        %424 = vset.pattern.permute.xlu0 0
        %425 = vperm.xlu0 %424, %v422
        %v426 = vpop.permute.xlu0 %425
        %vm428 = vcmask 261120
        %v430 = vsel %vm428, %v421, 0
        %432 = vmatpush.msra.mxu0 0.0
        %433 = vmatpush.msra.mxu0 0.0
        %434 = vmatpush.msra.mxu0 0.0
        %435 = vmatpush.msra.mxu0 0.0
        %436 = vmatpush.msra.mxu0 0.0
        %437 = vmatpush.msra.mxu0 0.0
        %438 = vmatpush.msra.mxu0 0.0
        %439 = vmatpush.msra.mxu0 0.0
        %440 = vmatpush.msra.mxu0 0.0
        %441 = vmatpush.msra.mxu0 0.0
        %442 = vmatpush.msra.mxu0 0.0
        %443 = vmatpush.msra.mxu0 0.0
        %444 = vmatpush.msra.mxu0 %v420
        %445 = vmatpush.msra.mxu0 %v419
        %446 = vmatpush.msra.mxu0 %v418
        %447 = vmatpush.msra.mxu0 %v417
        %448 = vmatmul.f32.gmra.mxu0 %v430
        %v449 = vpop.f32.mrf.mxu0
        %v450 = vadd.f32 %v426, %v449
        %451 = vdwg.mxu0
        %452 = vst [vmem:[%s282] sm:$0xf] %v450
        %s453 = sand.u32 %s186, 1
        %s454 = scalar_lea.sflag [#allocation3], %s453
        %s455 = sand.u32 %s186, 1
        %s456 = smul.addr %s455, 4
        %s457 = scalar_lea.vmem [#allocation2], %s456
        // Predicated region
        $region49: #{policy_net_forward.1} parent=47 // pred_check
          %p458 = pneg %p196
        $region50: #{policy_net_forward.1} parent=47 // pred_check_branch
          %460 = sbr.rel (%p458) target = $region52
        $region51: #{policy_net_forward.1} parent=47 // pred_region
          %462 = vsyncadd %s454, 0
          %s463 = smul.addr %s21, 4
          %s464 = scalar_lea.hbm %s7, %s463
          %s466 = sshll.u32 %s457, 4
          %s467 = int_to_ptr.vmem [resolvable:$true] %s466
          %s468 = sshll.u32 %s464, 4
          %s469 = int_to_ptr.hbm [resolvable:$true] %s468
          %471 = dma.vmem_to_hbm [thread:$0]  %s467, 64, %s469, %s454
        $region52: #{policy_net_forward.1} parent=47 // pred_fallthru
          _
      $region48: #{policy_net_forward.1} parent=5 // pred_fallthru
        _
      %p472 = scmp.le.s32.totalorder 2, %s16
      // Predicated region
      $region53: #{policy_net_forward.1} parent=5 // pred_check
        %p473 = pneg %p472
      $region54: #{policy_net_forward.1} parent=5 // pred_check_branch
        %475 = sbr.rel (%p473) target = $region56
      $region55: #{policy_net_forward.1} parent=5 // pred_region
        %s476 = ssub.s32 %s16, 2
        // Predicated region
        $region57: #{policy_net_forward.1} parent=55 // pred_check
          %p477 = pneg %p202
        $region58: #{policy_net_forward.1} parent=55 // pred_check_branch
          %479 = sbr.rel (%p477) target = $region60
        $region59: #{policy_net_forward.1} parent=55 // pred_region
          %s480 = sand.u32 %s187, 1
          %s481 = scalar_lea.sflag [#allocation3], %s480
          %s482 = sand.u32 %s187, 1
          %s483 = smul.addr %s482, 4
          %s484 = scalar_lea.vmem [#allocation2], %s483
          %486 = dma.done %s481, 64
        $region60: #{policy_net_forward.1} parent=55 // pred_fallthru
          _
      $region56: #{policy_net_forward.1} parent=5 // pred_fallthru
        _
    $region6: #{policy_net_forward.1} parent=1 // loop_footer
      %s20 = sadd.s32 1, %s16
    $region7: #{policy_net_forward.1} parent=1 // loop_footer_branch
      %15 = sbr.rel target = $region3
    $region8: #{policy_net_forward.1} parent=1 // loop_exit
      _
    %487 = vsyncpa [#allocation3], 1
    %s488 = scalar_lea.sflag [#allocation3], 1
    %489 = vsyncpa %s488, 1

</llo_original>
